<compile_context>
chip_gen: v7x
topology: tpu7x:2x2x1
jax: 0.10.0
libtpu: 0.0.40
codegen_flags: <defaults>
</compile_context>

<pallas_src>
import string

import jax
import jax.numpy as jnp
from jax import lax
from jax.experimental import pallas as pl
from jax.experimental.pallas import tpu as pltpu

F_PAD = 128  # fused / lane-padded width (>= hidden + output, multiple of 128)


def _round_up(x, m):
    return (x + m - 1) // m * m


def prepare_params(w_i2h, b_i2h, w_i2o, b_i2o, n_letters):
    """Fuse + pad the PyTorch-layout parameters once (outside the per-sequence path).

    Returns:
      w_xb : (I, F_PAD)     input-feature rows of the fused weight with the fused
                            bias pre-folded in (exactly one row is picked per step)
      w_h  : (F_PAD, F_PAD) hidden-feature rows of the fused weight, zero padded
                            (zero rows guarantee logit/pad lanes never feed back)
    """
    H = w_i2h.shape[0]
    O = w_i2o.shape[0]
    I = n_letters
    assert w_i2h.shape[1] == I + H and w_i2o.shape[1] == I + H
    assert H + O <= F_PAD

    w_fused = jnp.concatenate([w_i2h.T, w_i2o.T], axis=1)        # (I+H, H+O)
    w_fused = jnp.pad(w_fused, ((0, 0), (0, F_PAD - (H + O))))   # (I+H, F_PAD)
    b = jnp.pad(jnp.concatenate([b_i2h, b_i2o]), (0, F_PAD - (H + O)))
    w_xb = (w_fused[:I] + b[None, :]).astype(jnp.float32)        # (I, F_PAD)
    w_h = jnp.pad(w_fused[I:], ((0, F_PAD - H), (0, 0))).astype(jnp.float32)
    return w_xb, w_h


def rnn_forward_sequence(letter_ids, h0, w_xb, w_h, *, hidden_size, output_size):
    """Run the RNN cell over a whole sequence of one-hot letters (batch = 1).

    letter_ids : (seq_len,) int32 letter indices (positions of the one-hot input)
    h0         : (1, hidden_size) initial hidden state
    Returns (log_probs (seq_len, output_size), final_hidden (1, hidden_size)).
    """
    seq_len = int(letter_ids.shape[0])
    H, O, F = hidden_size, output_size, F_PAD
    S_pad = _round_up(max(seq_len, 1), 8)   # sublane-dense output slab

    # Guard against str.find() == -1 style ids, then gather the (bias-folded)
    # input rows once in the wrapper -> the kernel's serial step is matvec+add.
    ids = jnp.clip(letter_ids.astype(jnp.int32), 0, w_xb.shape[0] - 1)
    xb = jnp.pad(w_xb[ids], ((0, S_pad - seq_len), (0, 0)))            # (S_pad, F)
    h0_pad = jnp.pad(h0.astype(jnp.float32), ((0, 0), (0, F - H)))     # (1, F)

    def kernel(xb_ref, wh_ref, h0_ref, out_ref, hid_ref, pre_sc):
        # deterministic padding rows (never read by the wrapper, but keep clean)
        pre_sc[...] = jnp.zeros_like(pre_sc)

        def step(t, h):
            # fused i2h|i2o matvec on the hidden part + pre-gathered biased
            # input row. Lanes [0,H) of `pre` are h', lanes [H,H+O) are logits.
            # No per-step masking needed: w_h rows >= H are zero, so the
            # logit/pad lanes carried in `h` never feed the next state.
            x_row = xb_ref[pl.ds(t, 1), :]                              # (1, F)
            pre = jnp.dot(h, wh_ref[...],
                          preferred_element_type=jnp.float32) + x_row  # (1, F)
            pre_sc[pl.ds(t, 1), :] = pre
            return pre

        # Recurrence: in-kernel sequential loop (fully unrolled; seq is short).
        h_final = lax.fori_loop(0, seq_len, step, h0_ref[...], unroll=True)

        # Final hidden, written once as a dense (8,128) tile (row 0 is used).
        hid_ref[...] = jnp.broadcast_to(h_final, hid_ref.shape)

        # Batched log_softmax over the whole slab, off the serial critical path.
        pre_all = pre_sc[...]                                           # (S_pad, F)
        lane = lax.broadcasted_iota(jnp.int32, pre_all.shape, 1)
        valid = (lane >= H) & (lane < H + O)
        logits = jnp.where(valid, pre_all, float("-inf"))
        m = jnp.max(logits, axis=-1, keepdims=True)
        shifted = logits - m
        lse = jnp.log(jnp.sum(jnp.exp(shifted), axis=-1, keepdims=True))
        out_ref[...] = shifted - lse

    out_slab, hid_slab = pl.pallas_call(
        kernel,
        out_shape=(
            jax.ShapeDtypeStruct((S_pad, F), jnp.float32),
            jax.ShapeDtypeStruct((8, F), jnp.float32),
        ),
        in_specs=[
            pl.BlockSpec(memory_space=pltpu.MemorySpace.VMEM),  # xb: gathered rows
            pl.BlockSpec(memory_space=pltpu.MemorySpace.VMEM),  # fused hidden weight
            pl.BlockSpec(memory_space=pltpu.MemorySpace.VMEM),  # initial hidden
        ],
        out_specs=(
            pl.BlockSpec(memory_space=pltpu.MemorySpace.VMEM),  # log-prob slab
            pl.BlockSpec(memory_space=pltpu.MemorySpace.VMEM),  # final hidden tile
        ),
        scratch_shapes=[pltpu.VMEM((S_pad, F), jnp.float32)],   # pre-activation slab
    )(xb, w_h, h0_pad)

    return out_slab[:seq_len, H:H + O], hid_slab[0:1, :H]


def _reference(letter_ids, h0, w_i2h, b_i2h, w_i2o, b_i2o, n_letters):
    outs = []
    h = h0
    for idx in list(letter_ids):
        x = jax.nn.one_hot(idx, n_letters, dtype=jnp.float32)[None, :]
        combined = jnp.concatenate([x, h], axis=1)
        h = combined @ w_i2h.T + b_i2h
        logits = combined @ w_i2o.T + b_i2o
        outs.append(jax.nn.log_softmax(logits, axis=1))
    return jnp.concatenate(outs, axis=0), h


if __name__ == "__main__":
    # n_letters = len(string.ascii_letters + " .,;'") = 57, as in the tutorial.
    all_letters = string.ascii_letters + " .,;'"
    n_letters = len(all_letters)          # 57
    n_hidden = 64
    n_categories = 18

    key = jax.random.PRNGKey(0)
    k1, k2, k3, k4 = jax.random.split(key, 4)

    fan_in = n_letters + n_hidden
    bound = 1.0 / float(jnp.sqrt(jnp.float32(fan_in)))
    w_i2h = jax.random.uniform(k1, (n_hidden, fan_in), jnp.float32, -bound, bound)
    b_i2h = jax.random.uniform(k2, (n_hidden,), jnp.float32, -bound, bound)
    w_i2o = jax.random.uniform(k3, (n_categories, fan_in), jnp.float32, -bound, bound)
    b_i2o = jax.random.uniform(k4, (n_categories,), jnp.float32, -bound, bound)

    # lineToTensor('Albert') -> sequence of one-hot letters, encoded as indices.
    name = "Albert"
    letter_ids = jnp.array([all_letters.find(c) for c in name], dtype=jnp.int32)
    h0 = jnp.zeros((1, n_hidden), jnp.float32)     # RNN.initHidden()

    w_xb, w_h = prepare_params(w_i2h, b_i2h, w_i2o, b_i2o, n_letters)
    out, new_h = rnn_forward_sequence(
        letter_ids, h0, w_xb, w_h,
        hidden_size=n_hidden, output_size=n_categories)
    out = jax.block_until_ready(out)
    new_h = jax.block_until_ready(new_h)

    ref_out, ref_h = _reference(letter_ids, h0, w_i2h, b_i2h, w_i2o, b_i2o, n_letters)
    assert out.shape == (len(name), n_categories)
    assert new_h.shape == (1, n_hidden)
    assert jnp.allclose(out, ref_out, atol=1e-4), "log_softmax outputs mismatch"
    assert jnp.allclose(new_h, ref_h, atol=1e-4), "final hidden mismatch"

    print("KERNEL_OK")
</pallas_src>

<mosaic_0001>
module attributes {stable_mosaic.version = 11 : i64} {
  func.func @kernel(%arg0: memref<8x128xf32, #tpu.memory_space<vmem>>, %arg1: memref<128x128xf32, #tpu.memory_space<vmem>>, %arg2: memref<1x128xf32, #tpu.memory_space<vmem>>, %arg3: memref<8x128xf32, #tpu.memory_space<vmem>>, %arg4: memref<8x128xf32, #tpu.memory_space<vmem>>, %arg5: memref<8x128xf32, #tpu.memory_space<vmem>>) attributes {dimension_semantics = [], scalar_prefetch = 0 : i64, scratch_operands = 1 : i64, tpu.core_type = #tpu.core_type<tc>} {
    %cst = arith.constant 0.000000e+00 : f32
    %0 = vector.broadcast %cst : f32 to vector<8x128xf32>
    %c0 = arith.constant 0 : index
    %c0_0 = arith.constant 0 : index
    %1 = vector.load %arg5[%c0, %c0_0] : memref<8x128xf32, #tpu.memory_space<vmem>>, vector<8x128xf32>
    tpu.vector_store %arg5[%c0, %c0_0], %0 {strides = array<i32>} : memref<8x128xf32, #tpu.memory_space<vmem>>, vector<8x128xf32>,
    %c0_1 = arith.constant 0 : index
    %c0_2 = arith.constant 0 : index
    %2 = vector.load %arg2[%c0_1, %c0_2] : memref<1x128xf32, #tpu.memory_space<vmem>>, vector<1x128xf32>
    %c0_i32 = arith.constant 0 : i32
    %3 = arith.index_cast %c0_i32 : i32 to index
    %c0_3 = arith.constant 0 : index
    %4 = vector.load %arg0[%3, %c0_3] : memref<8x128xf32, #tpu.memory_space<vmem>>, vector<1x128xf32>
    %c0_4 = arith.constant 0 : index
    %c0_5 = arith.constant 0 : index
    %5 = vector.load %arg1[%c0_4, %c0_5] : memref<128x128xf32, #tpu.memory_space<vmem>>, vector<128x128xf32>
    %cst_6 = arith.constant dense<0.000000e+00> : vector<1x128xf32>
    %6 = tpu.matmul %2, %5, %cst_6 {dimension_numbers = #tpu.dot_dimension_numbers<[1], [0], [0], [1], [0, 0, 1, 1], [], []>} : vector<1x128xf32>, vector<128x128xf32>, vector<1x128xf32> -> vector<1x128xf32>
    %7 = arith.addf %6, %4 : vector<1x128xf32>
    %8 = arith.index_cast %c0_i32 : i32 to index
    %c0_7 = arith.constant 0 : index
    %9 = vector.load %arg5[%8, %c0_7] : memref<8x128xf32, #tpu.memory_space<vmem>>, vector<1x128xf32>
    tpu.vector_store %arg5[%8, %c0_7], %7 {strides = array<i32>} : memref<8x128xf32, #tpu.memory_space<vmem>>, vector<1x128xf32>,
    %c1_i32 = arith.constant 1 : i32
    %10 = arith.index_cast %c1_i32 : i32 to index
    %c0_8 = arith.constant 0 : index
    %11 = vector.load %arg0[%10, %c0_8] : memref<8x128xf32, #tpu.memory_space<vmem>>, vector<1x128xf32>
    %c0_9 = arith.constant 0 : index
    %c0_10 = arith.constant 0 : index
    %12 = vector.load %arg1[%c0_9, %c0_10] : memref<128x128xf32, #tpu.memory_space<vmem>>, vector<128x128xf32>
    %cst_11 = arith.constant dense<0.000000e+00> : vector<1x128xf32>
    %13 = tpu.matmul %7, %12, %cst_11 {dimension_numbers = #tpu.dot_dimension_numbers<[1], [0], [0], [1], [0, 0, 1, 1], [], []>} : vector<1x128xf32>, vector<128x128xf32>, vector<1x128xf32> -> vector<1x128xf32>
    %14 = arith.addf %13, %11 : vector<1x128xf32>
    %15 = arith.index_cast %c1_i32 : i32 to index
    %c0_12 = arith.constant 0 : index
    %16 = vector.load %arg5[%15, %c0_12] : memref<8x128xf32, #tpu.memory_space<vmem>>, vector<1x128xf32>
    tpu.vector_store %arg5[%15, %c0_12], %14 {strides = array<i32>} : memref<8x128xf32, #tpu.memory_space<vmem>>, vector<1x128xf32>,
    %c2_i32 = arith.constant 2 : i32
    %17 = arith.index_cast %c2_i32 : i32 to index
    %c0_13 = arith.constant 0 : index
    %18 = vector.load %arg0[%17, %c0_13] : memref<8x128xf32, #tpu.memory_space<vmem>>, vector<1x128xf32>
    %c0_14 = arith.constant 0 : index
    %c0_15 = arith.constant 0 : index
    %19 = vector.load %arg1[%c0_14, %c0_15] : memref<128x128xf32, #tpu.memory_space<vmem>>, vector<128x128xf32>
    %cst_16 = arith.constant dense<0.000000e+00> : vector<1x128xf32>
    %20 = tpu.matmul %14, %19, %cst_16 {dimension_numbers = #tpu.dot_dimension_numbers<[1], [0], [0], [1], [0, 0, 1, 1], [], []>} : vector<1x128xf32>, vector<128x128xf32>, vector<1x128xf32> -> vector<1x128xf32>
    %21 = arith.addf %20, %18 : vector<1x128xf32>
    %22 = arith.index_cast %c2_i32 : i32 to index
    %c0_17 = arith.constant 0 : index
    %23 = vector.load %arg5[%22, %c0_17] : memref<8x128xf32, #tpu.memory_space<vmem>>, vector<1x128xf32>
    tpu.vector_store %arg5[%22, %c0_17], %21 {strides = array<i32>} : memref<8x128xf32, #tpu.memory_space<vmem>>, vector<1x128xf32>,
    %c3_i32 = arith.constant 3 : i32
    %24 = arith.index_cast %c3_i32 : i32 to index
    %c0_18 = arith.constant 0 : index
    %25 = vector.load %arg0[%24, %c0_18] : memref<8x128xf32, #tpu.memory_space<vmem>>, vector<1x128xf32>
    %c0_19 = arith.constant 0 : index
    %c0_20 = arith.constant 0 : index
    %26 = vector.load %arg1[%c0_19, %c0_20] : memref<128x128xf32, #tpu.memory_space<vmem>>, vector<128x128xf32>
    %cst_21 = arith.constant dense<0.000000e+00> : vector<1x128xf32>
    %27 = tpu.matmul %21, %26, %cst_21 {dimension_numbers = #tpu.dot_dimension_numbers<[1], [0], [0], [1], [0, 0, 1, 1], [], []>} : vector<1x128xf32>, vector<128x128xf32>, vector<1x128xf32> -> vector<1x128xf32>
    %28 = arith.addf %27, %25 : vector<1x128xf32>
    %29 = arith.index_cast %c3_i32 : i32 to index
    %c0_22 = arith.constant 0 : index
    %30 = vector.load %arg5[%29, %c0_22] : memref<8x128xf32, #tpu.memory_space<vmem>>, vector<1x128xf32>
    tpu.vector_store %arg5[%29, %c0_22], %28 {strides = array<i32>} : memref<8x128xf32, #tpu.memory_space<vmem>>, vector<1x128xf32>,
    %c4_i32 = arith.constant 4 : i32
    %31 = arith.index_cast %c4_i32 : i32 to index
    %c0_23 = arith.constant 0 : index
    %32 = vector.load %arg0[%31, %c0_23] : memref<8x128xf32, #tpu.memory_space<vmem>>, vector<1x128xf32>
    %c0_24 = arith.constant 0 : index
    %c0_25 = arith.constant 0 : index
    %33 = vector.load %arg1[%c0_24, %c0_25] : memref<128x128xf32, #tpu.memory_space<vmem>>, vector<128x128xf32>
    %cst_26 = arith.constant dense<0.000000e+00> : vector<1x128xf32>
    %34 = tpu.matmul %28, %33, %cst_26 {dimension_numbers = #tpu.dot_dimension_numbers<[1], [0], [0], [1], [0, 0, 1, 1], [], []>} : vector<1x128xf32>, vector<128x128xf32>, vector<1x128xf32> -> vector<1x128xf32>
    %35 = arith.addf %34, %32 : vector<1x128xf32>
    %36 = arith.index_cast %c4_i32 : i32 to index
    %c0_27 = arith.constant 0 : index
    %37 = vector.load %arg5[%36, %c0_27] : memref<8x128xf32, #tpu.memory_space<vmem>>, vector<1x128xf32>
    tpu.vector_store %arg5[%36, %c0_27], %35 {strides = array<i32>} : memref<8x128xf32, #tpu.memory_space<vmem>>, vector<1x128xf32>,
    %c5_i32 = arith.constant 5 : i32
    %38 = arith.index_cast %c5_i32 : i32 to index
    %c0_28 = arith.constant 0 : index
    %39 = vector.load %arg0[%38, %c0_28] : memref<8x128xf32, #tpu.memory_space<vmem>>, vector<1x128xf32>
    %c0_29 = arith.constant 0 : index
    %c0_30 = arith.constant 0 : index
    %40 = vector.load %arg1[%c0_29, %c0_30] : memref<128x128xf32, #tpu.memory_space<vmem>>, vector<128x128xf32>
    %cst_31 = arith.constant dense<0.000000e+00> : vector<1x128xf32>
    %41 = tpu.matmul %35, %40, %cst_31 {dimension_numbers = #tpu.dot_dimension_numbers<[1], [0], [0], [1], [0, 0, 1, 1], [], []>} : vector<1x128xf32>, vector<128x128xf32>, vector<1x128xf32> -> vector<1x128xf32>
    %42 = arith.addf %41, %39 : vector<1x128xf32>
    %43 = arith.index_cast %c5_i32 : i32 to index
    %c0_32 = arith.constant 0 : index
    %44 = vector.load %arg5[%43, %c0_32] : memref<8x128xf32, #tpu.memory_space<vmem>>, vector<1x128xf32>
    tpu.vector_store %arg5[%43, %c0_32], %42 {strides = array<i32>} : memref<8x128xf32, #tpu.memory_space<vmem>>, vector<1x128xf32>,
    %c6_i32 = arith.constant 6 : i32
    %45 = vector.shape_cast %42 : vector<1x128xf32> to vector<1x128xf32>
    %46 = vector.broadcast %45 : vector<1x128xf32> to vector<8x128xf32>
    %c0_33 = arith.constant 0 : index
    %c0_34 = arith.constant 0 : index
    %47 = vector.load %arg4[%c0_33, %c0_34] : memref<8x128xf32, #tpu.memory_space<vmem>>, vector<8x128xf32>
    tpu.vector_store %arg4[%c0_33, %c0_34], %46 {strides = array<i32>} : memref<8x128xf32, #tpu.memory_space<vmem>>, vector<8x128xf32>,
    %c0_35 = arith.constant 0 : index
    %c0_36 = arith.constant 0 : index
    %48 = vector.load %arg5[%c0_35, %c0_36] : memref<8x128xf32, #tpu.memory_space<vmem>>, vector<8x128xf32>
    %49 = tpu.iota {dimensions = array<i32: 1>} : vector<8x128xi32>
    %c64_i32 = arith.constant 64 : i32
    %50 = vector.broadcast %c64_i32 : i32 to vector<8x128xi32>
    %51 = arith.cmpi sge, %49, %50 : vector<8x128xi32>
    %c82_i32 = arith.constant 82 : i32
    %52 = vector.broadcast %c82_i32 : i32 to vector<8x128xi32>
    %53 = arith.cmpi slt, %49, %52 : vector<8x128xi32>
    %54 = arith.andi %51, %53 : vector<8x128xi1>
    %cst_37 = arith.constant 0xFF800000 : f32
    %55 = vector.broadcast %cst_37 : f32 to vector<8x128xf32>
    %56 = arith.select %54, %48, %55 : vector<8x128xi1>, vector<8x128xf32>
    %cst_38 = arith.constant dense<0xFF800000> : vector<8xf32>
    %57 = vector.multi_reduction <maximumf>, %56, %cst_38 [1] : vector<8x128xf32> to vector<8xf32>
    %58 = vector.shape_cast %57 : vector<8xf32> to vector<8x1xf32>
    %59 = vector.broadcast %58 : vector<8x1xf32> to vector<8x128xf32>
    %60 = arith.subf %56, %59 : vector<8x128xf32>
    %61 = math.exp %60 : vector<8x128xf32>
    %cst_39 = arith.constant dense<0.000000e+00> : vector<8xf32>
    %62 = vector.multi_reduction <add>, %61, %cst_39 [1] : vector<8x128xf32> to vector<8xf32>
    %63 = vector.shape_cast %62 : vector<8xf32> to vector<8x1xf32>
    %64 = math.log %63 : vector<8x1xf32>
    %65 = vector.broadcast %64 : vector<8x1xf32> to vector<8x128xf32>
    %66 = arith.subf %60, %65 : vector<8x128xf32>
    %c0_40 = arith.constant 0 : index
    %c0_41 = arith.constant 0 : index
    %67 = vector.load %arg3[%c0_40, %c0_41] : memref<8x128xf32, #tpu.memory_space<vmem>>, vector<8x128xf32>
    tpu.vector_store %arg3[%c0_40, %c0_41], %66 {strides = array<i32>} : memref<8x128xf32, #tpu.memory_space<vmem>>, vector<8x128xf32>,
    return
  }
}

</mosaic_0001>

<llo_original>
// kernel: tpu_custom_call.1
$region0: #{tpu_custom_call.1}
  #allocation0 [shape = 'u32[]', space=smem, size = 0x4, offset = 0x4, fixed_abs, tag = 'smem constant byte address 0x4 - core index']
  #allocation1 [shape = 'u32[144,128]{1,0:T(1,128)}', space=vmem, size = 0x12000, scoped, tag = 'internal scratch']
  #allocation2 [shape = 'f32[8,128]{1,0:T(8,128)}', space=vmem, size = 0x1000, scoped, tag = 'scratch operand']
  %s0 = inlined_call_operand.hbm [shape: f32[8,128], index: 0, kind: input, shape index: {}]
  %s1 = inlined_call_operand.hbm [shape: f32[128,128], index: 1, kind: input, shape index: {}]
  %s2 = inlined_call_operand.vmem [shape: f32[1,128], index: 2, kind: input, shape index: {}]
  %s3 = inlined_call_operand.hbm [shape: f32[8,128], index: 3, kind: output, shape index: {0}]
  %s4 = inlined_call_operand.hbm [shape: f32[8,128], index: 4, kind: output, shape index: {1}]
  %5 = xla_tuple %s3, %s4
  %s6 = sld [smem:[#allocation0]]
  $region38: #{tpu_custom_call.1} parent=0
    _
  %s8 = ssub.s32 1, %s6
  %s9 = scalar_select 0, %s8, %s6
  $region1: #{tpu_custom_call.1} parent=0
    #allocation3 [shape = 'u8[4096]{0}', space=vmem, size = 0x1000, scoped, tag = 'input window, operand 0, single buffered']
    #allocation4 [shape = 's32[1]{0}', space=sflag, size = 0x4, scoped, tag = 'scoped memory for tpu_custom_call.1']
    #allocation5 [shape = 's32[1]{0}', space=sflag, size = 0x4, scoped, tag = 'scoped memory for tpu_custom_call.1']
    #allocation6 [shape = 'u8[65536]{0}', space=vmem, size = 0x10000, scoped, tag = 'input window, operand 1, single buffered']
    #allocation7 [shape = 's32[1]{0}', space=sflag, size = 0x4, scoped, tag = 'scoped memory for tpu_custom_call.1']
    #allocation8 [shape = 'u8[4096]{0}', space=vmem, size = 0x1000, scoped, tag = 'output window, operand 0, single buffered']
    #allocation9 [shape = 'u8[4096]{0}', space=vmem, size = 0x1000, scoped, tag = 'output window, operand 1, single buffered']
    #allocation10 [shape = 's32[1]{0}', space=sflag, size = 0x4, scoped, tag = 'scoped memory for tpu_custom_call.1']
    %10 = vsyncpa [#allocation4], 0
    %11 = vsyncpa [#allocation7], 0
    %12 = vsyncpa [#allocation5], 0
    %13 = vsyncpa [#allocation10], 0
    // Predicated region
    $region2: #{tpu_custom_call.1} parent=1 // pred_check
      _
    $region3: #{tpu_custom_call.1} parent=1 // pred_check_branch
      %15 = sbr.rel (0) target = $region5
    $region4: #{tpu_custom_call.1} parent=1 // pred_region
      %s17 = ssub.s32 128, 128
      %18 = vsyncadd [#allocation4], %s17
      %s20 = sshll.u32 [#allocation3], 4
      %s21 = int_to_ptr.vmem [resolvable:$true] %s20
      %23 = dma.hbm_to_vmem [thread:$0]  %s0, 128, %s21, [#allocation4]
    $region5: #{tpu_custom_call.1} parent=1 // pred_fallthru
      _
    // Predicated region
    $region6: #{tpu_custom_call.1} parent=1 // pred_check
      _
    $region7: #{tpu_custom_call.1} parent=1 // pred_check_branch
      %25 = sbr.rel (0) target = $region9
    $region8: #{tpu_custom_call.1} parent=1 // pred_region
      %s27 = ssub.s32 2048, 2048
      %28 = vsyncadd [#allocation7], %s27
      %s29 = sshll.u32 [#allocation6], 4
      %s30 = int_to_ptr.vmem [resolvable:$true] %s29
      %35 = dma.hbm_to_vmem [thread:$0]  %s1, 2048, %s30, [#allocation7], 128, 128, 8
    $region9: #{tpu_custom_call.1} parent=1 // pred_fallthru
      _
    // Predicated region
    $region10: #{tpu_custom_call.1} parent=1 // pred_check
      _
    $region11: #{tpu_custom_call.1} parent=1 // pred_check_branch
      %37 = sbr.rel (0) target = $region13
    $region12: #{tpu_custom_call.1} parent=1 // pred_region
      _
    $region13: #{tpu_custom_call.1} parent=1 // pred_fallthru
      _
    // Predicated region
    $region14: #{tpu_custom_call.1} parent=1 // pred_check
      _
    $region15: #{tpu_custom_call.1} parent=1 // pred_check_branch
      %39 = sbr.rel (0) target = $region17
    $region16: #{tpu_custom_call.1} parent=1 // pred_region
      %40 = dma.done [#allocation4], 128
    $region17: #{tpu_custom_call.1} parent=1 // pred_fallthru
      _
    // Predicated region
    $region18: #{tpu_custom_call.1} parent=1 // pred_check
      _
    $region19: #{tpu_custom_call.1} parent=1 // pred_check_branch
      %42 = sbr.rel (0) target = $region21
    $region20: #{tpu_custom_call.1} parent=1 // pred_region
      %43 = dma.done [#allocation7], 2048
    $region21: #{tpu_custom_call.1} parent=1 // pred_fallthru
      _
    %44 = vst [vmem:[#allocation2] sm:$0xff] 0.0
    %v45 = vld [vmem:[%s2] sm:$0x1]
    %v46 = vld [vmem:[#allocation3] sm:$0x1]
    %v47 = vld [vmem:[#allocation6] sm:$0xff]
    %v48 = vld [vmem:[#allocation6 + $0x8] sm:$0xff]
    %v49 = vld [vmem:[#allocation6 + $0x10] sm:$0xff]
    %v50 = vld [vmem:[#allocation6 + $0x18] sm:$0xff]
    %v51 = vld [vmem:[#allocation6 + $0x20] sm:$0xff]
    %v52 = vld [vmem:[#allocation6 + $0x28] sm:$0xff]
    %v53 = vld [vmem:[#allocation6 + $0x30] sm:$0xff]
    %v54 = vld [vmem:[#allocation6 + $0x38] sm:$0xff]
    %v55 = vld [vmem:[#allocation6 + $0x40] sm:$0xff]
    %v56 = vld [vmem:[#allocation6 + $0x48] sm:$0xff]
    %v57 = vld [vmem:[#allocation6 + $0x50] sm:$0xff]
    %v58 = vld [vmem:[#allocation6 + $0x58] sm:$0xff]
    %v59 = vld [vmem:[#allocation6 + $0x60] sm:$0xff]
    %v60 = vld [vmem:[#allocation6 + $0x68] sm:$0xff]
    %v61 = vld [vmem:[#allocation6 + $0x70] sm:$0xff]
    %v62 = vld [vmem:[#allocation6 + $0x78] sm:$0xff]
    %63 = vmatprep.subr.mxu0 0.0
    %64 = vmatpush1.msra.mxu0 %v47
    %65 = vmatprep.subr.mxu0 0.0
    %66 = vmatpush1.msra.mxu0 %v48
    %67 = vmatprep.subr.mxu0 0.0
    %68 = vmatpush1.msra.mxu0 %v49
    %69 = vmatprep.subr.mxu0 0.0
    %70 = vmatpush1.msra.mxu0 %v50
    %71 = vmatprep.subr.mxu0 0.0
    %72 = vmatpush1.msra.mxu0 %v51
    %73 = vmatprep.subr.mxu0 0.0
    %74 = vmatpush1.msra.mxu0 %v52
    %75 = vmatprep.subr.mxu0 0.0
    %76 = vmatpush1.msra.mxu0 %v53
    %77 = vmatprep.subr.mxu0 0.0
    %78 = vmatpush1.msra.mxu0 %v54
    %79 = vmatprep.subr.mxu0 0.0
    %80 = vmatpush1.msra.mxu0 %v55
    %81 = vmatprep.subr.mxu0 0.0
    %82 = vmatpush1.msra.mxu0 %v56
    %83 = vmatprep.subr.mxu0 0.0
    %84 = vmatpush1.msra.mxu0 %v57
    %85 = vmatprep.subr.mxu0 0.0
    %86 = vmatpush1.msra.mxu0 %v58
    %87 = vmatprep.subr.mxu0 0.0
    %88 = vmatpush1.msra.mxu0 %v59
    %89 = vmatprep.subr.mxu0 0.0
    %90 = vmatpush1.msra.mxu0 %v60
    %91 = vmatprep.subr.mxu0 0.0
    %92 = vmatpush1.msra.mxu0 %v61
    %93 = vmatprep.subr.mxu0 0.0
    %94 = vmatpush1.msra.mxu0 %v62
    %95 = vmatprep.subr.mxu0 0.0
    %96 = vmatpush1.msra.mxu0 0.0
    %97 = vmatprep.subr.mxu0 0.0
    %98 = vmatpush1.msra.mxu0 0.0
    %99 = vmatprep.subr.mxu0 0.0
    %100 = vmatpush1.msra.mxu0 0.0
    %101 = vmatprep.subr.mxu0 0.0
    %102 = vmatpush1.msra.mxu0 0.0
    %103 = vmatprep.subr.mxu0 0.0
    %104 = vmatpush1.msra.mxu0 0.0
    %105 = vmatprep.subr.mxu0 0.0
    %106 = vmatpush1.msra.mxu0 0.0
    %107 = vmatprep.subr.mxu0 0.0
    %108 = vmatpush1.msra.mxu0 0.0
    %109 = vmatprep.subr.mxu0 0.0
    %110 = vmatpush1.msra.mxu0 0.0
    %111 = vmatprep.subr.mxu0 0.0
    %112 = vmatpush1.msra.mxu0 0.0
    %113 = vmatprep.subr.mxu0 0.0
    %114 = vmatpush1.msra.mxu0 0.0
    %115 = vmatprep.subr.mxu0 0.0
    %116 = vmatpush1.msra.mxu0 0.0
    %117 = vmatprep.subr.mxu0 0.0
    %118 = vmatpush1.msra.mxu0 0.0
    %119 = vmatprep.subr.mxu0 0.0
    %120 = vmatpush1.msra.mxu0 0.0
    %121 = vmatprep.subr.mxu0 0.0
    %122 = vmatpush1.msra.mxu0 0.0
    %123 = vmatprep.subr.mxu0 0.0
    %124 = vmatpush1.msra.mxu0 0.0
    %125 = vmatprep.subr.mxu0 0.0
    %126 = vmatpush1.msra.mxu0 0.0
    %127 = vmatprep.mubr.f32.mxu0 0.0
    %128 = vmatmul.mubr.f32.gmra.mrb[0].mxu0 %v45
    %v129 = vpop.f32.mrb[0].mxu0
    %v130 = vadd.f32 %v46, %v129
    %v131 = vpop.f32.mrb[0].mxu0
    %132 = vdwg.mxu0
    %133 = vst [vmem:[#allocation2] sm:$0x1] %v130
    %v134 = vld [vmem:[#allocation3 + $0x1] sm:$0x1]
    %v135 = vld [vmem:[#allocation6] sm:$0xff]
    %v136 = vld [vmem:[#allocation6 + $0x8] sm:$0xff]
    %v137 = vld [vmem:[#allocation6 + $0x10] sm:$0xff]
    %v138 = vld [vmem:[#allocation6 + $0x18] sm:$0xff]
    %v139 = vld [vmem:[#allocation6 + $0x20] sm:$0xff]
    %v140 = vld [vmem:[#allocation6 + $0x28] sm:$0xff]
    %v141 = vld [vmem:[#allocation6 + $0x30] sm:$0xff]
    %v142 = vld [vmem:[#allocation6 + $0x38] sm:$0xff]
    %v143 = vld [vmem:[#allocation6 + $0x40] sm:$0xff]
    %v144 = vld [vmem:[#allocation6 + $0x48] sm:$0xff]
    %v145 = vld [vmem:[#allocation6 + $0x50] sm:$0xff]
    %v146 = vld [vmem:[#allocation6 + $0x58] sm:$0xff]
    %v147 = vld [vmem:[#allocation6 + $0x60] sm:$0xff]
    %v148 = vld [vmem:[#allocation6 + $0x68] sm:$0xff]
    %v149 = vld [vmem:[#allocation6 + $0x70] sm:$0xff]
    %v150 = vld [vmem:[#allocation6 + $0x78] sm:$0xff]
    %151 = vmatprep.subr.mxu0 0.0
    %152 = vmatpush1.msra.mxu0 %v135
    %153 = vmatprep.subr.mxu0 0.0
    %154 = vmatpush1.msra.mxu0 %v136
    %155 = vmatprep.subr.mxu0 0.0
    %156 = vmatpush1.msra.mxu0 %v137
    %157 = vmatprep.subr.mxu0 0.0
    %158 = vmatpush1.msra.mxu0 %v138
    %159 = vmatprep.subr.mxu0 0.0
    %160 = vmatpush1.msra.mxu0 %v139
    %161 = vmatprep.subr.mxu0 0.0
    %162 = vmatpush1.msra.mxu0 %v140
    %163 = vmatprep.subr.mxu0 0.0
    %164 = vmatpush1.msra.mxu0 %v141
    %165 = vmatprep.subr.mxu0 0.0
    %166 = vmatpush1.msra.mxu0 %v142
    %167 = vmatprep.subr.mxu0 0.0
    %168 = vmatpush1.msra.mxu0 %v143
    %169 = vmatprep.subr.mxu0 0.0
    %170 = vmatpush1.msra.mxu0 %v144
    %171 = vmatprep.subr.mxu0 0.0
    %172 = vmatpush1.msra.mxu0 %v145
    %173 = vmatprep.subr.mxu0 0.0
    %174 = vmatpush1.msra.mxu0 %v146
    %175 = vmatprep.subr.mxu0 0.0
    %176 = vmatpush1.msra.mxu0 %v147
    %177 = vmatprep.subr.mxu0 0.0
    %178 = vmatpush1.msra.mxu0 %v148
    %179 = vmatprep.subr.mxu0 0.0
    %180 = vmatpush1.msra.mxu0 %v149
    %181 = vmatprep.subr.mxu0 0.0
    %182 = vmatpush1.msra.mxu0 %v150
    %183 = vmatprep.subr.mxu0 0.0
    %184 = vmatpush1.msra.mxu0 0.0
    %185 = vmatprep.subr.mxu0 0.0
    %186 = vmatpush1.msra.mxu0 0.0
    %187 = vmatprep.subr.mxu0 0.0
    %188 = vmatpush1.msra.mxu0 0.0
    %189 = vmatprep.subr.mxu0 0.0
    %190 = vmatpush1.msra.mxu0 0.0
    %191 = vmatprep.subr.mxu0 0.0
    %192 = vmatpush1.msra.mxu0 0.0
    %193 = vmatprep.subr.mxu0 0.0
    %194 = vmatpush1.msra.mxu0 0.0
    %195 = vmatprep.subr.mxu0 0.0
    %196 = vmatpush1.msra.mxu0 0.0
    %197 = vmatprep.subr.mxu0 0.0
    %198 = vmatpush1.msra.mxu0 0.0
    %199 = vmatprep.subr.mxu0 0.0
    %200 = vmatpush1.msra.mxu0 0.0
    %201 = vmatprep.subr.mxu0 0.0
    %202 = vmatpush1.msra.mxu0 0.0
    %203 = vmatprep.subr.mxu0 0.0
    %204 = vmatpush1.msra.mxu0 0.0
    %205 = vmatprep.subr.mxu0 0.0
    %206 = vmatpush1.msra.mxu0 0.0
    %207 = vmatprep.subr.mxu0 0.0
    %208 = vmatpush1.msra.mxu0 0.0
    %209 = vmatprep.subr.mxu0 0.0
    %210 = vmatpush1.msra.mxu0 0.0
    %211 = vmatprep.subr.mxu0 0.0
    %212 = vmatpush1.msra.mxu0 0.0
    %213 = vmatprep.subr.mxu0 0.0
    %214 = vmatpush1.msra.mxu0 0.0
    %215 = vmatprep.mubr.f32.mxu0 0.0
    %216 = vmatmul.mubr.f32.gmra.mrb[0].mxu0 %v130
    %v217 = vpop.f32.mrb[0].mxu0
    %v218 = vadd.f32 %v134, %v217
    %v219 = vpop.f32.mrb[0].mxu0
    %220 = vdwg.mxu0
    %221 = vst [vmem:[#allocation2 + $0x1] sm:$0x1] %v218
    %v222 = vld [vmem:[#allocation3 + $0x2] sm:$0x1]
    %v223 = vld [vmem:[#allocation6] sm:$0xff]
    %v224 = vld [vmem:[#allocation6 + $0x8] sm:$0xff]
    %v225 = vld [vmem:[#allocation6 + $0x10] sm:$0xff]
    %v226 = vld [vmem:[#allocation6 + $0x18] sm:$0xff]
    %v227 = vld [vmem:[#allocation6 + $0x20] sm:$0xff]
    %v228 = vld [vmem:[#allocation6 + $0x28] sm:$0xff]
    %v229 = vld [vmem:[#allocation6 + $0x30] sm:$0xff]
    %v230 = vld [vmem:[#allocation6 + $0x38] sm:$0xff]
    %v231 = vld [vmem:[#allocation6 + $0x40] sm:$0xff]
    %v232 = vld [vmem:[#allocation6 + $0x48] sm:$0xff]
    %v233 = vld [vmem:[#allocation6 + $0x50] sm:$0xff]
    %v234 = vld [vmem:[#allocation6 + $0x58] sm:$0xff]
    %v235 = vld [vmem:[#allocation6 + $0x60] sm:$0xff]
    %v236 = vld [vmem:[#allocation6 + $0x68] sm:$0xff]
    %v237 = vld [vmem:[#allocation6 + $0x70] sm:$0xff]
    %v238 = vld [vmem:[#allocation6 + $0x78] sm:$0xff]
    %239 = vmatprep.subr.mxu0 0.0
    %240 = vmatpush1.msra.mxu0 %v223
    %241 = vmatprep.subr.mxu0 0.0
    %242 = vmatpush1.msra.mxu0 %v224
    %243 = vmatprep.subr.mxu0 0.0
    %244 = vmatpush1.msra.mxu0 %v225
    %245 = vmatprep.subr.mxu0 0.0
    %246 = vmatpush1.msra.mxu0 %v226
    %247 = vmatprep.subr.mxu0 0.0
    %248 = vmatpush1.msra.mxu0 %v227
    %249 = vmatprep.subr.mxu0 0.0
    %250 = vmatpush1.msra.mxu0 %v228
    %251 = vmatprep.subr.mxu0 0.0
    %252 = vmatpush1.msra.mxu0 %v229
    %253 = vmatprep.subr.mxu0 0.0
    %254 = vmatpush1.msra.mxu0 %v230
    %255 = vmatprep.subr.mxu0 0.0
    %256 = vmatpush1.msra.mxu0 %v231
    %257 = vmatprep.subr.mxu0 0.0
    %258 = vmatpush1.msra.mxu0 %v232
    %259 = vmatprep.subr.mxu0 0.0
    %260 = vmatpush1.msra.mxu0 %v233
    %261 = vmatprep.subr.mxu0 0.0
    %262 = vmatpush1.msra.mxu0 %v234
    %263 = vmatprep.subr.mxu0 0.0
    %264 = vmatpush1.msra.mxu0 %v235
    %265 = vmatprep.subr.mxu0 0.0
    %266 = vmatpush1.msra.mxu0 %v236
    %267 = vmatprep.subr.mxu0 0.0
    %268 = vmatpush1.msra.mxu0 %v237
    %269 = vmatprep.subr.mxu0 0.0
    %270 = vmatpush1.msra.mxu0 %v238
    %271 = vmatprep.subr.mxu0 0.0
    %272 = vmatpush1.msra.mxu0 0.0
    %273 = vmatprep.subr.mxu0 0.0
    %274 = vmatpush1.msra.mxu0 0.0
    %275 = vmatprep.subr.mxu0 0.0
    %276 = vmatpush1.msra.mxu0 0.0
    %277 = vmatprep.subr.mxu0 0.0
    %278 = vmatpush1.msra.mxu0 0.0
    %279 = vmatprep.subr.mxu0 0.0
    %280 = vmatpush1.msra.mxu0 0.0
    %281 = vmatprep.subr.mxu0 0.0
    %282 = vmatpush1.msra.mxu0 0.0
    %283 = vmatprep.subr.mxu0 0.0
    %284 = vmatpush1.msra.mxu0 0.0
    %285 = vmatprep.subr.mxu0 0.0
    %286 = vmatpush1.msra.mxu0 0.0
    %287 = vmatprep.subr.mxu0 0.0
    %288 = vmatpush1.msra.mxu0 0.0
    %289 = vmatprep.subr.mxu0 0.0
    %290 = vmatpush1.msra.mxu0 0.0
    %291 = vmatprep.subr.mxu0 0.0
    %292 = vmatpush1.msra.mxu0 0.0
    %293 = vmatprep.subr.mxu0 0.0
    %294 = vmatpush1.msra.mxu0 0.0
    %295 = vmatprep.subr.mxu0 0.0
    %296 = vmatpush1.msra.mxu0 0.0
    %297 = vmatprep.subr.mxu0 0.0
    %298 = vmatpush1.msra.mxu0 0.0
    %299 = vmatprep.subr.mxu0 0.0
    %300 = vmatpush1.msra.mxu0 0.0
    %301 = vmatprep.subr.mxu0 0.0
    %302 = vmatpush1.msra.mxu0 0.0
    %303 = vmatprep.mubr.f32.mxu0 0.0
    %304 = vmatmul.mubr.f32.gmra.mrb[0].mxu0 %v218
    %v305 = vpop.f32.mrb[0].mxu0
    %v306 = vadd.f32 %v222, %v305
    %v307 = vpop.f32.mrb[0].mxu0
    %308 = vdwg.mxu0
    %309 = vst [vmem:[#allocation2 + $0x2] sm:$0x1] %v306
    %v310 = vld [vmem:[#allocation3 + $0x3] sm:$0x1]
    %v311 = vld [vmem:[#allocation6] sm:$0xff]
    %v312 = vld [vmem:[#allocation6 + $0x8] sm:$0xff]
    %v313 = vld [vmem:[#allocation6 + $0x10] sm:$0xff]
    %v314 = vld [vmem:[#allocation6 + $0x18] sm:$0xff]
    %v315 = vld [vmem:[#allocation6 + $0x20] sm:$0xff]
    %v316 = vld [vmem:[#allocation6 + $0x28] sm:$0xff]
    %v317 = vld [vmem:[#allocation6 + $0x30] sm:$0xff]
    %v318 = vld [vmem:[#allocation6 + $0x38] sm:$0xff]
    %v319 = vld [vmem:[#allocation6 + $0x40] sm:$0xff]
    %v320 = vld [vmem:[#allocation6 + $0x48] sm:$0xff]
    %v321 = vld [vmem:[#allocation6 + $0x50] sm:$0xff]
    %v322 = vld [vmem:[#allocation6 + $0x58] sm:$0xff]
    %v323 = vld [vmem:[#allocation6 + $0x60] sm:$0xff]
    %v324 = vld [vmem:[#allocation6 + $0x68] sm:$0xff]
    %v325 = vld [vmem:[#allocation6 + $0x70] sm:$0xff]
    %v326 = vld [vmem:[#allocation6 + $0x78] sm:$0xff]
    %327 = vmatprep.subr.mxu0 0.0
    %328 = vmatpush1.msra.mxu0 %v311
    %329 = vmatprep.subr.mxu0 0.0
    %330 = vmatpush1.msra.mxu0 %v312
    %331 = vmatprep.subr.mxu0 0.0
    %332 = vmatpush1.msra.mxu0 %v313
    %333 = vmatprep.subr.mxu0 0.0
    %334 = vmatpush1.msra.mxu0 %v314
    %335 = vmatprep.subr.mxu0 0.0
    %336 = vmatpush1.msra.mxu0 %v315
    %337 = vmatprep.subr.mxu0 0.0
    %338 = vmatpush1.msra.mxu0 %v316
    %339 = vmatprep.subr.mxu0 0.0
    %340 = vmatpush1.msra.mxu0 %v317
    %341 = vmatprep.subr.mxu0 0.0
    %342 = vmatpush1.msra.mxu0 %v318
    %343 = vmatprep.subr.mxu0 0.0
    %344 = vmatpush1.msra.mxu0 %v319
    %345 = vmatprep.subr.mxu0 0.0
    %346 = vmatpush1.msra.mxu0 %v320
    %347 = vmatprep.subr.mxu0 0.0
    %348 = vmatpush1.msra.mxu0 %v321
    %349 = vmatprep.subr.mxu0 0.0
    %350 = vmatpush1.msra.mxu0 %v322
    %351 = vmatprep.subr.mxu0 0.0
    %352 = vmatpush1.msra.mxu0 %v323
    %353 = vmatprep.subr.mxu0 0.0
    %354 = vmatpush1.msra.mxu0 %v324
    %355 = vmatprep.subr.mxu0 0.0
    %356 = vmatpush1.msra.mxu0 %v325
    %357 = vmatprep.subr.mxu0 0.0
    %358 = vmatpush1.msra.mxu0 %v326
    %359 = vmatprep.subr.mxu0 0.0
    %360 = vmatpush1.msra.mxu0 0.0
    %361 = vmatprep.subr.mxu0 0.0
    %362 = vmatpush1.msra.mxu0 0.0
    %363 = vmatprep.subr.mxu0 0.0
    %364 = vmatpush1.msra.mxu0 0.0
    %365 = vmatprep.subr.mxu0 0.0
    %366 = vmatpush1.msra.mxu0 0.0
    %367 = vmatprep.subr.mxu0 0.0
    %368 = vmatpush1.msra.mxu0 0.0
    %369 = vmatprep.subr.mxu0 0.0
    %370 = vmatpush1.msra.mxu0 0.0
    %371 = vmatprep.subr.mxu0 0.0
    %372 = vmatpush1.msra.mxu0 0.0
    %373 = vmatprep.subr.mxu0 0.0
    %374 = vmatpush1.msra.mxu0 0.0
    %375 = vmatprep.subr.mxu0 0.0
    %376 = vmatpush1.msra.mxu0 0.0
    %377 = vmatprep.subr.mxu0 0.0
    %378 = vmatpush1.msra.mxu0 0.0
    %379 = vmatprep.subr.mxu0 0.0
    %380 = vmatpush1.msra.mxu0 0.0
    %381 = vmatprep.subr.mxu0 0.0
    %382 = vmatpush1.msra.mxu0 0.0
    %383 = vmatprep.subr.mxu0 0.0
    %384 = vmatpush1.msra.mxu0 0.0
    %385 = vmatprep.subr.mxu0 0.0
    %386 = vmatpush1.msra.mxu0 0.0
    %387 = vmatprep.subr.mxu0 0.0
    %388 = vmatpush1.msra.mxu0 0.0
    %389 = vmatprep.subr.mxu0 0.0
    %390 = vmatpush1.msra.mxu0 0.0
    %391 = vmatprep.mubr.f32.mxu0 0.0
    %392 = vmatmul.mubr.f32.gmra.mrb[0].mxu0 %v306
    %v393 = vpop.f32.mrb[0].mxu0
    %v394 = vadd.f32 %v310, %v393
    %v395 = vpop.f32.mrb[0].mxu0
    %396 = vdwg.mxu0
    %397 = vst [vmem:[#allocation2 + $0x3] sm:$0x1] %v394
    %v398 = vld [vmem:[#allocation3 + $0x4] sm:$0x1]
    %v399 = vld [vmem:[#allocation6] sm:$0xff]
    %v400 = vld [vmem:[#allocation6 + $0x8] sm:$0xff]
    %v401 = vld [vmem:[#allocation6 + $0x10] sm:$0xff]
    %v402 = vld [vmem:[#allocation6 + $0x18] sm:$0xff]
    %v403 = vld [vmem:[#allocation6 + $0x20] sm:$0xff]
    %v404 = vld [vmem:[#allocation6 + $0x28] sm:$0xff]
    %v405 = vld [vmem:[#allocation6 + $0x30] sm:$0xff]
    %v406 = vld [vmem:[#allocation6 + $0x38] sm:$0xff]
    %v407 = vld [vmem:[#allocation6 + $0x40] sm:$0xff]
    %v408 = vld [vmem:[#allocation6 + $0x48] sm:$0xff]
    %v409 = vld [vmem:[#allocation6 + $0x50] sm:$0xff]
    %v410 = vld [vmem:[#allocation6 + $0x58] sm:$0xff]
    %v411 = vld [vmem:[#allocation6 + $0x60] sm:$0xff]
    %v412 = vld [vmem:[#allocation6 + $0x68] sm:$0xff]
    %v413 = vld [vmem:[#allocation6 + $0x70] sm:$0xff]
    %v414 = vld [vmem:[#allocation6 + $0x78] sm:$0xff]
    %415 = vmatprep.subr.mxu0 0.0
    %416 = vmatpush1.msra.mxu0 %v399
    %417 = vmatprep.subr.mxu0 0.0
    %418 = vmatpush1.msra.mxu0 %v400
    %419 = vmatprep.subr.mxu0 0.0
    %420 = vmatpush1.msra.mxu0 %v401
    %421 = vmatprep.subr.mxu0 0.0
    %422 = vmatpush1.msra.mxu0 %v402
    %423 = vmatprep.subr.mxu0 0.0
    %424 = vmatpush1.msra.mxu0 %v403
    %425 = vmatprep.subr.mxu0 0.0
    %426 = vmatpush1.msra.mxu0 %v404
    %427 = vmatprep.subr.mxu0 0.0
    %428 = vmatpush1.msra.mxu0 %v405
    %429 = vmatprep.subr.mxu0 0.0
    %430 = vmatpush1.msra.mxu0 %v406
    %431 = vmatprep.subr.mxu0 0.0
    %432 = vmatpush1.msra.mxu0 %v407
    %433 = vmatprep.subr.mxu0 0.0
    %434 = vmatpush1.msra.mxu0 %v408
    %435 = vmatprep.subr.mxu0 0.0
    %436 = vmatpush1.msra.mxu0 %v409
    %437 = vmatprep.subr.mxu0 0.0
    %438 = vmatpush1.msra.mxu0 %v410
    %439 = vmatprep.subr.mxu0 0.0
    %440 = vmatpush1.msra.mxu0 %v411
    %441 = vmatprep.subr.mxu0 0.0
    %442 = vmatpush1.msra.mxu0 %v412
    %443 = vmatprep.subr.mxu0 0.0
    %444 = vmatpush1.msra.mxu0 %v413
    %445 = vmatprep.subr.mxu0 0.0
    %446 = vmatpush1.msra.mxu0 %v414
    %447 = vmatprep.subr.mxu0 0.0
    %448 = vmatpush1.msra.mxu0 0.0
    %449 = vmatprep.subr.mxu0 0.0
    %450 = vmatpush1.msra.mxu0 0.0
    %451 = vmatprep.subr.mxu0 0.0
    %452 = vmatpush1.msra.mxu0 0.0
    %453 = vmatprep.subr.mxu0 0.0
    %454 = vmatpush1.msra.mxu0 0.0
    %455 = vmatprep.subr.mxu0 0.0
    %456 = vmatpush1.msra.mxu0 0.0
    %457 = vmatprep.subr.mxu0 0.0
    %458 = vmatpush1.msra.mxu0 0.0
    %459 = vmatprep.subr.mxu0 0.0
    %460 = vmatpush1.msra.mxu0 0.0
    %461 = vmatprep.subr.mxu0 0.0
    %462 = vmatpush1.msra.mxu0 0.0
    %463 = vmatprep.subr.mxu0 0.0
    %464 = vmatpush1.msra.mxu0 0.0
    %465 = vmatprep.subr.mxu0 0.0
    %466 = vmatpush1.msra.mxu0 0.0
    %467 = vmatprep.subr.mxu0 0.0
    %468 = vmatpush1.msra.mxu0 0.0
    %469 = vmatprep.subr.mxu0 0.0
    %470 = vmatpush1.msra.mxu0 0.0
    %471 = vmatprep.subr.mxu0 0.0
    %472 = vmatpush1.msra.mxu0 0.0
    %473 = vmatprep.subr.mxu0 0.0
    %474 = vmatpush1.msra.mxu0 0.0
    %475 = vmatprep.subr.mxu0 0.0
    %476 = vmatpush1.msra.mxu0 0.0
    %477 = vmatprep.subr.mxu0 0.0
    %478 = vmatpush1.msra.mxu0 0.0
    %479 = vmatprep.mubr.f32.mxu0 0.0
    %480 = vmatmul.mubr.f32.gmra.mrb[0].mxu0 %v394
    %v481 = vpop.f32.mrb[0].mxu0
    %v482 = vadd.f32 %v398, %v481
    %v483 = vpop.f32.mrb[0].mxu0
    %484 = vdwg.mxu0
    %485 = vst [vmem:[#allocation2 + $0x4] sm:$0x1] %v482
    %v486 = vld [vmem:[#allocation3 + $0x5] sm:$0x1]
    %v487 = vld [vmem:[#allocation6] sm:$0xff]
    %v488 = vld [vmem:[#allocation6 + $0x8] sm:$0xff]
    %v489 = vld [vmem:[#allocation6 + $0x10] sm:$0xff]
    %v490 = vld [vmem:[#allocation6 + $0x18] sm:$0xff]
    %v491 = vld [vmem:[#allocation6 + $0x20] sm:$0xff]
    %v492 = vld [vmem:[#allocation6 + $0x28] sm:$0xff]
    %v493 = vld [vmem:[#allocation6 + $0x30] sm:$0xff]
    %v494 = vld [vmem:[#allocation6 + $0x38] sm:$0xff]
    %v495 = vld [vmem:[#allocation6 + $0x40] sm:$0xff]
    %v496 = vld [vmem:[#allocation6 + $0x48] sm:$0xff]
    %v497 = vld [vmem:[#allocation6 + $0x50] sm:$0xff]
    %v498 = vld [vmem:[#allocation6 + $0x58] sm:$0xff]
    %v499 = vld [vmem:[#allocation6 + $0x60] sm:$0xff]
    %v500 = vld [vmem:[#allocation6 + $0x68] sm:$0xff]
    %v501 = vld [vmem:[#allocation6 + $0x70] sm:$0xff]
    %v502 = vld [vmem:[#allocation6 + $0x78] sm:$0xff]
    %503 = vmatprep.subr.mxu0 0.0
    %504 = vmatpush1.msra.mxu0 %v487
    %505 = vmatprep.subr.mxu0 0.0
    %506 = vmatpush1.msra.mxu0 %v488
    %507 = vmatprep.subr.mxu0 0.0
    %508 = vmatpush1.msra.mxu0 %v489
    %509 = vmatprep.subr.mxu0 0.0
    %510 = vmatpush1.msra.mxu0 %v490
    %511 = vmatprep.subr.mxu0 0.0
    %512 = vmatpush1.msra.mxu0 %v491
    %513 = vmatprep.subr.mxu0 0.0
    %514 = vmatpush1.msra.mxu0 %v492
    %515 = vmatprep.subr.mxu0 0.0
    %516 = vmatpush1.msra.mxu0 %v493
    %517 = vmatprep.subr.mxu0 0.0
    %518 = vmatpush1.msra.mxu0 %v494
    %519 = vmatprep.subr.mxu0 0.0
    %520 = vmatpush1.msra.mxu0 %v495
    %521 = vmatprep.subr.mxu0 0.0
    %522 = vmatpush1.msra.mxu0 %v496
    %523 = vmatprep.subr.mxu0 0.0
    %524 = vmatpush1.msra.mxu0 %v497
    %525 = vmatprep.subr.mxu0 0.0
    %526 = vmatpush1.msra.mxu0 %v498
    %527 = vmatprep.subr.mxu0 0.0
    %528 = vmatpush1.msra.mxu0 %v499
    %529 = vmatprep.subr.mxu0 0.0
    %530 = vmatpush1.msra.mxu0 %v500
    %531 = vmatprep.subr.mxu0 0.0
    %532 = vmatpush1.msra.mxu0 %v501
    %533 = vmatprep.subr.mxu0 0.0
    %534 = vmatpush1.msra.mxu0 %v502
    %535 = vmatprep.subr.mxu0 0.0
    %536 = vmatpush1.msra.mxu0 0.0
    %537 = vmatprep.subr.mxu0 0.0
    %538 = vmatpush1.msra.mxu0 0.0
    %539 = vmatprep.subr.mxu0 0.0
    %540 = vmatpush1.msra.mxu0 0.0
    %541 = vmatprep.subr.mxu0 0.0
    %542 = vmatpush1.msra.mxu0 0.0
    %543 = vmatprep.subr.mxu0 0.0
    %544 = vmatpush1.msra.mxu0 0.0
    %545 = vmatprep.subr.mxu0 0.0
    %546 = vmatpush1.msra.mxu0 0.0
    %547 = vmatprep.subr.mxu0 0.0
    %548 = vmatpush1.msra.mxu0 0.0
    %549 = vmatprep.subr.mxu0 0.0
    %550 = vmatpush1.msra.mxu0 0.0
    %551 = vmatprep.subr.mxu0 0.0
    %552 = vmatpush1.msra.mxu0 0.0
    %553 = vmatprep.subr.mxu0 0.0
    %554 = vmatpush1.msra.mxu0 0.0
    %555 = vmatprep.subr.mxu0 0.0
    %556 = vmatpush1.msra.mxu0 0.0
    %557 = vmatprep.subr.mxu0 0.0
    %558 = vmatpush1.msra.mxu0 0.0
    %559 = vmatprep.subr.mxu0 0.0
    %560 = vmatpush1.msra.mxu0 0.0
    %561 = vmatprep.subr.mxu0 0.0
    %562 = vmatpush1.msra.mxu0 0.0
    %563 = vmatprep.subr.mxu0 0.0
    %564 = vmatpush1.msra.mxu0 0.0
    %565 = vmatprep.subr.mxu0 0.0
    %566 = vmatpush1.msra.mxu0 0.0
    %567 = vmatprep.mubr.f32.mxu0 0.0
    %568 = vmatmul.mubr.f32.gmra.mrb[0].mxu0 %v482
    %v569 = vpop.f32.mrb[0].mxu0
    %v570 = vadd.f32 %v486, %v569
    %v571 = vpop.f32.mrb[0].mxu0
    %572 = vdwg.mxu0
    %573 = vst [vmem:[#allocation2 + $0x5] sm:$0x1] %v570
    %v574 = vlaneseq
    %v575 = vshrl.u32 %v574, 7
    %v576 = vsub.s32 0, %v575
    %v577 = vrot.slane %v570, %v576
    %578 = vst [vmem:[#allocation9] sm:$0xff] %v577
    %v579 = vld [vmem:[#allocation2] sm:$0xff]
    %v580 = vlaneseq
    %v581 = vand.u32 %v580, 127
    %vm582 = vcmp.ge.s32.totalorder %v581, 64
    %vm583 = vcmp.lt.s32.totalorder %v581, 82
    %vm584 = vmand %vm582, %vm583
    %v585 = vsel %vm584, %v579, -inf
    %586 = vmax.xlane.f32.xlu0 %v585
    %v587 = vpop.xlane.xlu0 %586
    %v588 = vsub.f32 %v585, %v587
    %v589 = vmul.f32 %v588, 1.442695
    %v590 = vpow.pop %v589
    %591 = vadd.xlane.f32.xlu0 %v590
    %v592 = vpop.xlane.xlu0 %591
    %v593 = vlog2.pop %v592
    %v594 = vmul.f32 %v593, 0.6931472
    %v595 = vsub.f32 %v588, %v594
    %596 = vst [vmem:[#allocation8] sm:$0xff] %v595
    // Predicated region
    $region22: #{tpu_custom_call.1} parent=1 // pred_check
      _
    $region23: #{tpu_custom_call.1} parent=1 // pred_check_branch
      %598 = sbr.rel (0) target = $region25
    $region24: #{tpu_custom_call.1} parent=1 // pred_region
      %s600 = ssub.s32 128, 128
      %601 = vsyncadd [#allocation5], %s600
      %s603 = sshll.u32 [#allocation8], 4
      %s604 = int_to_ptr.vmem [resolvable:$true] %s603
      %606 = dma.vmem_to_hbm [thread:$0]  %s604, 128, %s3, [#allocation5]
    $region25: #{tpu_custom_call.1} parent=1 // pred_fallthru
      _
    // Predicated region
    $region26: #{tpu_custom_call.1} parent=1 // pred_check
      _
    $region27: #{tpu_custom_call.1} parent=1 // pred_check_branch
      %608 = sbr.rel (0) target = $region29
    $region28: #{tpu_custom_call.1} parent=1 // pred_region
      %s610 = ssub.s32 128, 128
      %611 = vsyncadd [#allocation10], %s610
      %s613 = sshll.u32 [#allocation9], 4
      %s614 = int_to_ptr.vmem [resolvable:$true] %s613
      %616 = dma.vmem_to_hbm [thread:$0]  %s614, 128, %s4, [#allocation10]
    $region29: #{tpu_custom_call.1} parent=1 // pred_fallthru
      _
    // Predicated region
    $region30: #{tpu_custom_call.1} parent=1 // pred_check
      _
    $region31: #{tpu_custom_call.1} parent=1 // pred_check_branch
      %618 = sbr.rel (0) target = $region33
    $region32: #{tpu_custom_call.1} parent=1 // pred_region
      %619 = dma.done [#allocation5], 128
    $region33: #{tpu_custom_call.1} parent=1 // pred_fallthru
      _
    // Predicated region
    $region34: #{tpu_custom_call.1} parent=1 // pred_check
      _
    $region35: #{tpu_custom_call.1} parent=1 // pred_check_branch
      %621 = sbr.rel (0) target = $region37
    $region36: #{tpu_custom_call.1} parent=1 // pred_region
      %622 = dma.done [#allocation10], 128
    $region37: #{tpu_custom_call.1} parent=1 // pred_fallthru
      _
    %623 = vsyncpa [#allocation4], 1
    %624 = vsyncpa [#allocation7], 1
    %625 = vsyncpa [#allocation5], 1
    %626 = vsyncpa [#allocation10], 1

</llo_original>
